<compile_context>
chip_gen: v5e
topology: v5e:2x2
jax: 0.10.0
libtpu: 0.0.40
codegen_flags: <defaults>
</compile_context>

<pallas_src>
import jax
import jax.numpy as jnp
from jax.experimental import pallas as pl
from jax.experimental.pallas import tpu as pltpu

IMG_SIZE = 16
N_QUBITS = 4
PATCH = 2                       # 2x2 non-overlapping patches, stride 2
S = IMG_SIZE // PATCH           # 8
OUT_DIM = N_QUBITS * S * S      # 256  (= 1 * qf.out_dim * qf.out_dim)
N_CLASSES = 2


# ----------------------------------------------------------------------------
# Fused kernel: quanv filter (2-block per-patch MLP) + linear head + log_softmax
# ----------------------------------------------------------------------------
def fused_kernel(x_ref, wh_ref, scal_ref, o_ref):
    # x_ref   : (4, bt, 64) VMEM  pixel-position-major patches (lane-dense)
    # wh_ref  : (8, 64)     VMEM  head weight, row = cls*4 + channel, col = patch
    # scal_ref: (42,)       SMEM  packed small weights:
    #           [0:16)=w1 (4i+j), [16:20)=b1, [20:36)=w2 (4j+k),
    #           [36:40)=b2, [40:42)=head bias
    # o_ref   : (bt, 2)     VMEM  per-sample log-probabilities

    xs = [x_ref[i] for i in range(N_QUBITS)]            # each (bt, 64)

    def w1(i, j):  return scal_ref[4 * i + j]
    def b1(j):     return scal_ref[16 + j]
    def w2(j, k):  return scal_ref[20 + 4 * j + k]
    def b2(k):     return scal_ref[36 + k]
    def bhead(c):  return scal_ref[40 + c]

    # Quanv block 1: per-patch 4->4 linear + tanh.  Broadcast scalar FMAs on
    # the VPU (a 4x4 contraction would waste the MXU); tanh goes to the EUP.
    h = []
    for j in range(N_QUBITS):
        a = xs[0] * w1(0, j)
        for i in range(1, N_QUBITS):
            a = a + xs[i] * w1(i, j)
        h.append(jnp.tanh(a + b1(j)))

    # Quanv block 2: per-patch 4->4 linear (VPU FMAs).
    f = []
    for k in range(N_QUBITS):
        a = h[0] * w2(0, k)
        for j in range(1, N_QUBITS):
            a = a + h[j] * w2(j, k)
        f.append(a + b2(k))                              # (bt, 64)

    # Head on the NCHW flatten:
    #   logits[b, c] = sum_k sum_p f_k[b, p] * wh[c*4 + k, p] + bias[c]
    wh = wh_ref[...]                                     # (8, 64)
    logit = []
    for c in range(N_CLASSES):
        a = f[0] * wh[c * N_QUBITS:c * N_QUBITS + 1, :]
        for k in range(1, N_QUBITS):
            a = a + f[k] * wh[c * N_QUBITS + k:c * N_QUBITS + k + 1, :]
        logit.append(jnp.sum(a, axis=-1, keepdims=True) + bhead(c))   # (bt, 1)

    # Numerically stable log_softmax over the 2 classes.
    m = jnp.maximum(logit[0], logit[1])
    z0 = logit[0] - m
    z1 = logit[1] - m
    lse = jnp.log(jnp.exp(z0) + jnp.exp(z1))
    out = jnp.concatenate([z0 - lse, z1 - lse], axis=-1)  # (bt, 2)
    o_ref[...] = out.astype(o_ref.dtype)


def _pick_batch_tile(B, cap=512):
    # bt must equal B or be a multiple of 8 (block-shape rule on the
    # second-to-last dim); aim for >= 2 grid steps (v7x megacore) and cap the
    # tile so VMEM use stays tiny on every generation (incl. v7x's 64 MiB).
    if B <= 8:
        return B
    bt = ((B + 1) // 2 + 7) // 8 * 8
    return max(8, min(cap, bt))


def fused_quanv_head(x_cm, wh, scal):
    # x_cm: (4, B, 64) f32, wh: (8, 64) f32, scal: (42,) f32
    B = x_cm.shape[1]
    bt = _pick_batch_tile(B)
    grid = (pl.cdiv(B, bt),)
    return pl.pallas_call(
        fused_kernel,
        out_shape=jax.ShapeDtypeStruct((B, N_CLASSES), jnp.float32),
        grid_spec=pltpu.PrefetchScalarGridSpec(
            num_scalar_prefetch=0,
            grid=grid,
            in_specs=[
                # batch-tiled patch streams (lane-dense 64-wide last dim)
                pl.BlockSpec((N_QUBITS, bt, S * S), lambda i: (0, i, 0)),
                # head weight: constant block index -> DMA'd once
                pl.BlockSpec((N_CLASSES * N_QUBITS, S * S), lambda i: (0, 0)),
                # packed tiny weights live in SMEM (scalar reads, no streaming)
                pl.BlockSpec(memory_space=pltpu.MemorySpace.SMEM),
            ],
            out_specs=pl.BlockSpec((bt, N_CLASSES), lambda i: (i, 0)),
        ),
        compiler_params=pltpu.CompilerParams(
            dimension_semantics=("parallel",)),
    )(x_cm, wh, scal)


# ----------------------------------------------------------------------------
# Glue (parameter setup + the single tiny layout transpose in plain JAX)
# ----------------------------------------------------------------------------
def init_params(key):
    k1, k2, k3, k4, k5, k6 = jax.random.split(key, 6)
    w1 = jax.random.normal(k1, (N_QUBITS, N_QUBITS), jnp.float32) * 0.5
    b1 = jax.random.normal(k2, (N_QUBITS,), jnp.float32) * 0.1
    w2 = jax.random.normal(k3, (N_QUBITS, N_QUBITS), jnp.float32) * 0.5
    b2 = jax.random.normal(k4, (N_QUBITS,), jnp.float32) * 0.1
    # torch.nn.Linear(256, 2): weight (2, 256), columns in NCHW-flatten order
    # (index = channel*64 + patch), bias (2,)
    wl = jax.random.normal(k5, (N_CLASSES, OUT_DIM), jnp.float32) / jnp.sqrt(OUT_DIM)
    bl = jax.random.normal(k6, (N_CLASSES,), jnp.float32) * 0.1
    # Kernel-side head weight: (2, 256) -> (8, 64), row = cls*4 + channel.
    wh = wl.reshape(N_CLASSES * N_QUBITS, S * S)
    # Pack all tiny scalars for SMEM: w1 | b1 | w2 | b2 | head bias  (42 floats)
    scal = jnp.concatenate(
        [w1.reshape(-1), b1, w2.reshape(-1), b2, bl]).astype(jnp.float32)
    return dict(w1=w1, b1=b1, w2=w2, b2=b2, wl=wl, bl=bl, wh=wh, scal=scal)


@jax.jit
def random_model_forward(x, params):
    x = x.reshape(-1, IMG_SIZE, IMG_SIZE)                 # x.view(-1, 16, 16)
    B = x.shape[0]
    # Pixel-position-major patch layout (4, B, 64): one cheap XLA transpose of
    # the tiny input feeding the fused kernel lane-densely; last axis = oy*8+ox
    # so the NCHW flatten needs no weight-column permutation.
    xp = x.reshape(B, S, PATCH, S, PATCH)                 # (B, oy, r, ox, c)
    x_cm = jnp.transpose(xp, (2, 4, 0, 1, 3)).reshape(N_QUBITS, B, S * S)
    return fused_quanv_head(x_cm, params["wh"], params["scal"])


# Pure-JAX reference (mirrors the PyTorch semantics with NCHW flatten)
def reference_forward(x, params):
    x = x.reshape(-1, IMG_SIZE, IMG_SIZE)
    B = x.shape[0]
    xp = x.reshape(B, S, PATCH, S, PATCH)
    patches = jnp.transpose(xp, (0, 1, 3, 2, 4)).reshape(B, S * S, N_QUBITS)
    h = jnp.tanh(patches @ params["w1"] + params["b1"])
    feat = h @ params["w2"] + params["b2"]                # (B, 64, 4)
    nchw = jnp.transpose(feat.reshape(B, S, S, N_QUBITS), (0, 3, 1, 2))
    flat = nchw.reshape(B, OUT_DIM)
    logits = flat @ params["wl"].T + params["bl"]
    return jax.nn.log_softmax(logits, axis=-1)


if __name__ == "__main__":
    key = jax.random.PRNGKey(0)
    kx, kp = jax.random.split(key)
    params = init_params(kp)

    # Small example batch (B=2) — single grid step.
    x = jax.random.normal(kx, (2, 1, IMG_SIZE, IMG_SIZE), jnp.float32)
    out = jax.block_until_ready(random_model_forward(x, params))
    ref = reference_forward(x, params)
    assert out.shape == (2, N_CLASSES), out.shape
    assert jnp.allclose(out, ref, atol=1e-4, rtol=1e-4), (out, ref)
    assert jnp.allclose(jnp.sum(jnp.exp(out), axis=-1), 1.0, atol=1e-5)

    # Also exercise the batch-tiled multi-step ("parallel") path.
    x16 = jax.random.normal(kx, (16, 1, IMG_SIZE, IMG_SIZE), jnp.float32)
    out16 = jax.block_until_ready(random_model_forward(x16, params))
    ref16 = reference_forward(x16, params)
    assert out16.shape == (16, N_CLASSES), out16.shape
    assert jnp.allclose(out16, ref16, atol=1e-4, rtol=1e-4)

    print("KERNEL_OK")
</pallas_src>

<mosaic_0001>
module attributes {stable_mosaic.version = 11 : i64} {
  func.func @fused_kernel(%arg0: i32, %arg1: memref<4x2x64xf32, #tpu.memory_space<vmem>>, %arg2: memref<8x64xf32, #tpu.memory_space<vmem>>, %arg3: memref<42xf32, #tpu.memory_space<smem>>, %arg4: memref<2x2xf32, #tpu.memory_space<vmem>>) attributes {dimension_semantics = [#tpu.dimension_semantics<parallel>], iteration_bounds = array<i64: 1>, scalar_prefetch = 0 : i64, scratch_operands = 0 : i64, tpu.core_type = #tpu.core_type<tc>, window_params = [{transform_indices = @transform_0, window_bounds = array<i64: 4, 2, 64>}, {pipeline_mode = #tpu.pipeline_mode<synchronous>, transform_indices = @transform_1, window_bounds = array<i64: 8, 64>}, {transform_indices = @transform_2, window_bounds = array<i64: 42>}, {transform_indices = @transform_3, window_bounds = array<i64: 2, 2>}]} {
    %c0 = arith.constant 0 : index
    %c0_0 = arith.constant 0 : index
    %c0_1 = arith.constant 0 : index
    %0 = vector.load %arg1[%c0, %c0_0, %c0_1] : memref<4x2x64xf32, #tpu.memory_space<vmem>>, vector<1x2x64xf32>
    %1 = vector.shape_cast %0 : vector<1x2x64xf32> to vector<2x64xf32>
    %c1 = arith.constant 1 : index
    %c0_2 = arith.constant 0 : index
    %c0_3 = arith.constant 0 : index
    %2 = vector.load %arg1[%c1, %c0_2, %c0_3] : memref<4x2x64xf32, #tpu.memory_space<vmem>>, vector<1x2x64xf32>
    %3 = vector.shape_cast %2 : vector<1x2x64xf32> to vector<2x64xf32>
    %c2 = arith.constant 2 : index
    %c0_4 = arith.constant 0 : index
    %c0_5 = arith.constant 0 : index
    %4 = vector.load %arg1[%c2, %c0_4, %c0_5] : memref<4x2x64xf32, #tpu.memory_space<vmem>>, vector<1x2x64xf32>
    %5 = vector.shape_cast %4 : vector<1x2x64xf32> to vector<2x64xf32>
    %c3 = arith.constant 3 : index
    %c0_6 = arith.constant 0 : index
    %c0_7 = arith.constant 0 : index
    %6 = vector.load %arg1[%c3, %c0_6, %c0_7] : memref<4x2x64xf32, #tpu.memory_space<vmem>>, vector<1x2x64xf32>
    %7 = vector.shape_cast %6 : vector<1x2x64xf32> to vector<2x64xf32>
    %c0_8 = arith.constant 0 : index
    %8 = memref.load %arg3[%c0_8] : memref<42xf32, #tpu.memory_space<smem>>
    %9 = vector.broadcast %8 : f32 to vector<2x64xf32>
    %10 = arith.mulf %1, %9 : vector<2x64xf32>
    %c4 = arith.constant 4 : index
    %11 = memref.load %arg3[%c4] : memref<42xf32, #tpu.memory_space<smem>>
    %12 = vector.broadcast %11 : f32 to vector<2x64xf32>
    %13 = arith.mulf %3, %12 : vector<2x64xf32>
    %14 = arith.addf %10, %13 : vector<2x64xf32>
    %c8 = arith.constant 8 : index
    %15 = memref.load %arg3[%c8] : memref<42xf32, #tpu.memory_space<smem>>
    %16 = vector.broadcast %15 : f32 to vector<2x64xf32>
    %17 = arith.mulf %5, %16 : vector<2x64xf32>
    %18 = arith.addf %14, %17 : vector<2x64xf32>
    %c12 = arith.constant 12 : index
    %19 = memref.load %arg3[%c12] : memref<42xf32, #tpu.memory_space<smem>>
    %20 = vector.broadcast %19 : f32 to vector<2x64xf32>
    %21 = arith.mulf %7, %20 : vector<2x64xf32>
    %22 = arith.addf %18, %21 : vector<2x64xf32>
    %c16 = arith.constant 16 : index
    %23 = memref.load %arg3[%c16] : memref<42xf32, #tpu.memory_space<smem>>
    %24 = vector.broadcast %23 : f32 to vector<2x64xf32>
    %25 = arith.addf %22, %24 : vector<2x64xf32>
    %26 = math.tanh %25 : vector<2x64xf32>
    %c1_9 = arith.constant 1 : index
    %27 = memref.load %arg3[%c1_9] : memref<42xf32, #tpu.memory_space<smem>>
    %28 = vector.broadcast %27 : f32 to vector<2x64xf32>
    %29 = arith.mulf %1, %28 : vector<2x64xf32>
    %c5 = arith.constant 5 : index
    %30 = memref.load %arg3[%c5] : memref<42xf32, #tpu.memory_space<smem>>
    %31 = vector.broadcast %30 : f32 to vector<2x64xf32>
    %32 = arith.mulf %3, %31 : vector<2x64xf32>
    %33 = arith.addf %29, %32 : vector<2x64xf32>
    %c9 = arith.constant 9 : index
    %34 = memref.load %arg3[%c9] : memref<42xf32, #tpu.memory_space<smem>>
    %35 = vector.broadcast %34 : f32 to vector<2x64xf32>
    %36 = arith.mulf %5, %35 : vector<2x64xf32>
    %37 = arith.addf %33, %36 : vector<2x64xf32>
    %c13 = arith.constant 13 : index
    %38 = memref.load %arg3[%c13] : memref<42xf32, #tpu.memory_space<smem>>
    %39 = vector.broadcast %38 : f32 to vector<2x64xf32>
    %40 = arith.mulf %7, %39 : vector<2x64xf32>
    %41 = arith.addf %37, %40 : vector<2x64xf32>
    %c17 = arith.constant 17 : index
    %42 = memref.load %arg3[%c17] : memref<42xf32, #tpu.memory_space<smem>>
    %43 = vector.broadcast %42 : f32 to vector<2x64xf32>
    %44 = arith.addf %41, %43 : vector<2x64xf32>
    %45 = math.tanh %44 : vector<2x64xf32>
    %c2_10 = arith.constant 2 : index
    %46 = memref.load %arg3[%c2_10] : memref<42xf32, #tpu.memory_space<smem>>
    %47 = vector.broadcast %46 : f32 to vector<2x64xf32>
    %48 = arith.mulf %1, %47 : vector<2x64xf32>
    %c6 = arith.constant 6 : index
    %49 = memref.load %arg3[%c6] : memref<42xf32, #tpu.memory_space<smem>>
    %50 = vector.broadcast %49 : f32 to vector<2x64xf32>
    %51 = arith.mulf %3, %50 : vector<2x64xf32>
    %52 = arith.addf %48, %51 : vector<2x64xf32>
    %c10 = arith.constant 10 : index
    %53 = memref.load %arg3[%c10] : memref<42xf32, #tpu.memory_space<smem>>
    %54 = vector.broadcast %53 : f32 to vector<2x64xf32>
    %55 = arith.mulf %5, %54 : vector<2x64xf32>
    %56 = arith.addf %52, %55 : vector<2x64xf32>
    %c14 = arith.constant 14 : index
    %57 = memref.load %arg3[%c14] : memref<42xf32, #tpu.memory_space<smem>>
    %58 = vector.broadcast %57 : f32 to vector<2x64xf32>
    %59 = arith.mulf %7, %58 : vector<2x64xf32>
    %60 = arith.addf %56, %59 : vector<2x64xf32>
    %c18 = arith.constant 18 : index
    %61 = memref.load %arg3[%c18] : memref<42xf32, #tpu.memory_space<smem>>
    %62 = vector.broadcast %61 : f32 to vector<2x64xf32>
    %63 = arith.addf %60, %62 : vector<2x64xf32>
    %64 = math.tanh %63 : vector<2x64xf32>
    %c3_11 = arith.constant 3 : index
    %65 = memref.load %arg3[%c3_11] : memref<42xf32, #tpu.memory_space<smem>>
    %66 = vector.broadcast %65 : f32 to vector<2x64xf32>
    %67 = arith.mulf %1, %66 : vector<2x64xf32>
    %c7 = arith.constant 7 : index
    %68 = memref.load %arg3[%c7] : memref<42xf32, #tpu.memory_space<smem>>
    %69 = vector.broadcast %68 : f32 to vector<2x64xf32>
    %70 = arith.mulf %3, %69 : vector<2x64xf32>
    %71 = arith.addf %67, %70 : vector<2x64xf32>
    %c11 = arith.constant 11 : index
    %72 = memref.load %arg3[%c11] : memref<42xf32, #tpu.memory_space<smem>>
    %73 = vector.broadcast %72 : f32 to vector<2x64xf32>
    %74 = arith.mulf %5, %73 : vector<2x64xf32>
    %75 = arith.addf %71, %74 : vector<2x64xf32>
    %c15 = arith.constant 15 : index
    %76 = memref.load %arg3[%c15] : memref<42xf32, #tpu.memory_space<smem>>
    %77 = vector.broadcast %76 : f32 to vector<2x64xf32>
    %78 = arith.mulf %7, %77 : vector<2x64xf32>
    %79 = arith.addf %75, %78 : vector<2x64xf32>
    %c19 = arith.constant 19 : index
    %80 = memref.load %arg3[%c19] : memref<42xf32, #tpu.memory_space<smem>>
    %81 = vector.broadcast %80 : f32 to vector<2x64xf32>
    %82 = arith.addf %79, %81 : vector<2x64xf32>
    %83 = math.tanh %82 : vector<2x64xf32>
    %c20 = arith.constant 20 : index
    %84 = memref.load %arg3[%c20] : memref<42xf32, #tpu.memory_space<smem>>
    %85 = vector.broadcast %84 : f32 to vector<2x64xf32>
    %86 = arith.mulf %26, %85 : vector<2x64xf32>
    %c24 = arith.constant 24 : index
    %87 = memref.load %arg3[%c24] : memref<42xf32, #tpu.memory_space<smem>>
    %88 = vector.broadcast %87 : f32 to vector<2x64xf32>
    %89 = arith.mulf %45, %88 : vector<2x64xf32>
    %90 = arith.addf %86, %89 : vector<2x64xf32>
    %c28 = arith.constant 28 : index
    %91 = memref.load %arg3[%c28] : memref<42xf32, #tpu.memory_space<smem>>
    %92 = vector.broadcast %91 : f32 to vector<2x64xf32>
    %93 = arith.mulf %64, %92 : vector<2x64xf32>
    %94 = arith.addf %90, %93 : vector<2x64xf32>
    %c32 = arith.constant 32 : index
    %95 = memref.load %arg3[%c32] : memref<42xf32, #tpu.memory_space<smem>>
    %96 = vector.broadcast %95 : f32 to vector<2x64xf32>
    %97 = arith.mulf %83, %96 : vector<2x64xf32>
    %98 = arith.addf %94, %97 : vector<2x64xf32>
    %c36 = arith.constant 36 : index
    %99 = memref.load %arg3[%c36] : memref<42xf32, #tpu.memory_space<smem>>
    %100 = vector.broadcast %99 : f32 to vector<2x64xf32>
    %101 = arith.addf %98, %100 : vector<2x64xf32>
    %c21 = arith.constant 21 : index
    %102 = memref.load %arg3[%c21] : memref<42xf32, #tpu.memory_space<smem>>
    %103 = vector.broadcast %102 : f32 to vector<2x64xf32>
    %104 = arith.mulf %26, %103 : vector<2x64xf32>
    %c25 = arith.constant 25 : index
    %105 = memref.load %arg3[%c25] : memref<42xf32, #tpu.memory_space<smem>>
    %106 = vector.broadcast %105 : f32 to vector<2x64xf32>
    %107 = arith.mulf %45, %106 : vector<2x64xf32>
    %108 = arith.addf %104, %107 : vector<2x64xf32>
    %c29 = arith.constant 29 : index
    %109 = memref.load %arg3[%c29] : memref<42xf32, #tpu.memory_space<smem>>
    %110 = vector.broadcast %109 : f32 to vector<2x64xf32>
    %111 = arith.mulf %64, %110 : vector<2x64xf32>
    %112 = arith.addf %108, %111 : vector<2x64xf32>
    %c33 = arith.constant 33 : index
    %113 = memref.load %arg3[%c33] : memref<42xf32, #tpu.memory_space<smem>>
    %114 = vector.broadcast %113 : f32 to vector<2x64xf32>
    %115 = arith.mulf %83, %114 : vector<2x64xf32>
    %116 = arith.addf %112, %115 : vector<2x64xf32>
    %c37 = arith.constant 37 : index
    %117 = memref.load %arg3[%c37] : memref<42xf32, #tpu.memory_space<smem>>
    %118 = vector.broadcast %117 : f32 to vector<2x64xf32>
    %119 = arith.addf %116, %118 : vector<2x64xf32>
    %c22 = arith.constant 22 : index
    %120 = memref.load %arg3[%c22] : memref<42xf32, #tpu.memory_space<smem>>
    %121 = vector.broadcast %120 : f32 to vector<2x64xf32>
    %122 = arith.mulf %26, %121 : vector<2x64xf32>
    %c26 = arith.constant 26 : index
    %123 = memref.load %arg3[%c26] : memref<42xf32, #tpu.memory_space<smem>>
    %124 = vector.broadcast %123 : f32 to vector<2x64xf32>
    %125 = arith.mulf %45, %124 : vector<2x64xf32>
    %126 = arith.addf %122, %125 : vector<2x64xf32>
    %c30 = arith.constant 30 : index
    %127 = memref.load %arg3[%c30] : memref<42xf32, #tpu.memory_space<smem>>
    %128 = vector.broadcast %127 : f32 to vector<2x64xf32>
    %129 = arith.mulf %64, %128 : vector<2x64xf32>
    %130 = arith.addf %126, %129 : vector<2x64xf32>
    %c34 = arith.constant 34 : index
    %131 = memref.load %arg3[%c34] : memref<42xf32, #tpu.memory_space<smem>>
    %132 = vector.broadcast %131 : f32 to vector<2x64xf32>
    %133 = arith.mulf %83, %132 : vector<2x64xf32>
    %134 = arith.addf %130, %133 : vector<2x64xf32>
    %c38 = arith.constant 38 : index
    %135 = memref.load %arg3[%c38] : memref<42xf32, #tpu.memory_space<smem>>
    %136 = vector.broadcast %135 : f32 to vector<2x64xf32>
    %137 = arith.addf %134, %136 : vector<2x64xf32>
    %c23 = arith.constant 23 : index
    %138 = memref.load %arg3[%c23] : memref<42xf32, #tpu.memory_space<smem>>
    %139 = vector.broadcast %138 : f32 to vector<2x64xf32>
    %140 = arith.mulf %26, %139 : vector<2x64xf32>
    %c27 = arith.constant 27 : index
    %141 = memref.load %arg3[%c27] : memref<42xf32, #tpu.memory_space<smem>>
    %142 = vector.broadcast %141 : f32 to vector<2x64xf32>
    %143 = arith.mulf %45, %142 : vector<2x64xf32>
    %144 = arith.addf %140, %143 : vector<2x64xf32>
    %c31 = arith.constant 31 : index
    %145 = memref.load %arg3[%c31] : memref<42xf32, #tpu.memory_space<smem>>
    %146 = vector.broadcast %145 : f32 to vector<2x64xf32>
    %147 = arith.mulf %64, %146 : vector<2x64xf32>
    %148 = arith.addf %144, %147 : vector<2x64xf32>
    %c35 = arith.constant 35 : index
    %149 = memref.load %arg3[%c35] : memref<42xf32, #tpu.memory_space<smem>>
    %150 = vector.broadcast %149 : f32 to vector<2x64xf32>
    %151 = arith.mulf %83, %150 : vector<2x64xf32>
    %152 = arith.addf %148, %151 : vector<2x64xf32>
    %c39 = arith.constant 39 : index
    %153 = memref.load %arg3[%c39] : memref<42xf32, #tpu.memory_space<smem>>
    %154 = vector.broadcast %153 : f32 to vector<2x64xf32>
    %155 = arith.addf %152, %154 : vector<2x64xf32>
    %c0_12 = arith.constant 0 : index
    %c0_13 = arith.constant 0 : index
    %156 = vector.load %arg2[%c0_12, %c0_13] : memref<8x64xf32, #tpu.memory_space<vmem>>, vector<8x64xf32>
    %157 = vector.extract_strided_slice %156 {offsets = [0, 0], sizes = [1, 64], strides = [1, 1]} : vector<8x64xf32> to vector<1x64xf32>
    %158 = vector.broadcast %157 : vector<1x64xf32> to vector<2x64xf32>
    %159 = arith.mulf %101, %158 : vector<2x64xf32>
    %160 = vector.extract_strided_slice %156 {offsets = [1, 0], sizes = [1, 64], strides = [1, 1]} : vector<8x64xf32> to vector<1x64xf32>
    %161 = vector.broadcast %160 : vector<1x64xf32> to vector<2x64xf32>
    %162 = arith.mulf %119, %161 : vector<2x64xf32>
    %163 = arith.addf %159, %162 : vector<2x64xf32>
    %164 = vector.extract_strided_slice %156 {offsets = [2, 0], sizes = [1, 64], strides = [1, 1]} : vector<8x64xf32> to vector<1x64xf32>
    %165 = vector.broadcast %164 : vector<1x64xf32> to vector<2x64xf32>
    %166 = arith.mulf %137, %165 : vector<2x64xf32>
    %167 = arith.addf %163, %166 : vector<2x64xf32>
    %168 = vector.extract_strided_slice %156 {offsets = [3, 0], sizes = [1, 64], strides = [1, 1]} : vector<8x64xf32> to vector<1x64xf32>
    %169 = vector.broadcast %168 : vector<1x64xf32> to vector<2x64xf32>
    %170 = arith.mulf %155, %169 : vector<2x64xf32>
    %171 = arith.addf %167, %170 : vector<2x64xf32>
    %cst = arith.constant dense<0.000000e+00> : vector<2xf32>
    %172 = vector.multi_reduction <add>, %171, %cst [1] : vector<2x64xf32> to vector<2xf32>
    %173 = vector.shape_cast %172 : vector<2xf32> to vector<2x1xf32>
    %c40 = arith.constant 40 : index
    %174 = memref.load %arg3[%c40] : memref<42xf32, #tpu.memory_space<smem>>
    %175 = vector.broadcast %174 : f32 to vector<2x1xf32>
    %176 = arith.addf %173, %175 : vector<2x1xf32>
    %177 = vector.extract_strided_slice %156 {offsets = [4, 0], sizes = [1, 64], strides = [1, 1]} : vector<8x64xf32> to vector<1x64xf32>
    %178 = vector.broadcast %177 : vector<1x64xf32> to vector<2x64xf32>
    %179 = arith.mulf %101, %178 : vector<2x64xf32>
    %180 = vector.extract_strided_slice %156 {offsets = [5, 0], sizes = [1, 64], strides = [1, 1]} : vector<8x64xf32> to vector<1x64xf32>
    %181 = vector.broadcast %180 : vector<1x64xf32> to vector<2x64xf32>
    %182 = arith.mulf %119, %181 : vector<2x64xf32>
    %183 = arith.addf %179, %182 : vector<2x64xf32>
    %184 = vector.extract_strided_slice %156 {offsets = [6, 0], sizes = [1, 64], strides = [1, 1]} : vector<8x64xf32> to vector<1x64xf32>
    %185 = vector.broadcast %184 : vector<1x64xf32> to vector<2x64xf32>
    %186 = arith.mulf %137, %185 : vector<2x64xf32>
    %187 = arith.addf %183, %186 : vector<2x64xf32>
    %188 = vector.extract_strided_slice %156 {offsets = [7, 0], sizes = [1, 64], strides = [1, 1]} : vector<8x64xf32> to vector<1x64xf32>
    %189 = vector.broadcast %188 : vector<1x64xf32> to vector<2x64xf32>
    %190 = arith.mulf %155, %189 : vector<2x64xf32>
    %191 = arith.addf %187, %190 : vector<2x64xf32>
    %cst_14 = arith.constant dense<0.000000e+00> : vector<2xf32>
    %192 = vector.multi_reduction <add>, %191, %cst_14 [1] : vector<2x64xf32> to vector<2xf32>
    %193 = vector.shape_cast %192 : vector<2xf32> to vector<2x1xf32>
    %c41 = arith.constant 41 : index
    %194 = memref.load %arg3[%c41] : memref<42xf32, #tpu.memory_space<smem>>
    %195 = vector.broadcast %194 : f32 to vector<2x1xf32>
    %196 = arith.addf %193, %195 : vector<2x1xf32>
    %197 = arith.maximumf %176, %196 : vector<2x1xf32>
    %198 = arith.subf %176, %197 : vector<2x1xf32>
    %199 = arith.subf %196, %197 : vector<2x1xf32>
    %200 = math.exp %198 : vector<2x1xf32>
    %201 = math.exp %199 : vector<2x1xf32>
    %202 = arith.addf %200, %201 : vector<2x1xf32>
    %203 = math.log %202 : vector<2x1xf32>
    %204 = arith.subf %198, %203 : vector<2x1xf32>
    %205 = arith.subf %199, %203 : vector<2x1xf32>
    %206 = tpu.concatenate %204, %205 in 1 : vector<2x1xf32>, vector<2x1xf32> -> vector<2x2xf32>
    %c0_15 = arith.constant 0 : index
    %c0_16 = arith.constant 0 : index
    %207 = vector.load %arg4[%c0_15, %c0_16] : memref<2x2xf32, #tpu.memory_space<vmem>>, vector<2x2xf32>
    tpu.vector_store %arg4[%c0_15, %c0_16], %206 {strides = array<i32>} : memref<2x2xf32, #tpu.memory_space<vmem>>, vector<2x2xf32>,
    return
  }
  func.func @transform_0(%arg0: i32) -> (i32, i32, i32) {
    %c0_i32 = arith.constant 0 : i32
    %c0_i32_0 = arith.constant 0 : i32
    %c0_i32_1 = arith.constant 0 : i32
    return %c0_i32, %arg0, %c0_i32_0 : i32, i32, i32
  }
  func.func @transform_1(%arg0: i32) -> (i32, i32) {
    %c0_i32 = arith.constant 0 : i32
    %c0_i32_0 = arith.constant 0 : i32
    %c0_i32_1 = arith.constant 0 : i32
    return %c0_i32, %c0_i32_0 : i32, i32
  }
  func.func @transform_2(%arg0: i32) -> i32 {
    %c0_i32 = arith.constant 0 : i32
    %c0_i32_0 = arith.constant 0 : i32
    return %c0_i32 : i32
  }
  func.func @transform_3(%arg0: i32) -> (i32, i32) {
    %c0_i32 = arith.constant 0 : i32
    %c0_i32_0 = arith.constant 0 : i32
    return %arg0, %c0_i32 : i32, i32
  }
}

</mosaic_0001>

<llo_original>
// kernel: random_model_forward.1
$region0: #{random_model_forward.1}
  #allocation0 [shape = 'u32[]', space=smem, size = 0x4, offset = 0x4, fixed_abs, tag = 'smem constant byte address 0x4 - core index']
  #allocation1 [shape = 'u32[72,128]{1,0:T(1,128)}', space=vmem, size = 0x9000, scoped, tag = 'internal scratch']
  %s0 = inlined_call_operand.vmem [shape: f32[4,2,64], index: 0, kind: input, shape index: {}]
  %s1 = inlined_call_operand.vmem [shape: f32[8,64], index: 1, kind: input, shape index: {}]
  %s2 = inlined_call_operand.vmem [shape: f32[42], index: 2, kind: input, shape index: {}]
  %s3 = inlined_call_operand.hbm [shape: f32[2,2], index: 3, kind: output, shape index: {}]
  %s4 = sld [smem:[#allocation0]]
  $region26: #{random_model_forward.1} parent=0
    _
  %s6 = ssub.s32 1, %s4
  %s7 = scalar_select 0, %s6, %s4
  $region1: #{random_model_forward.1} parent=0
    #allocation2 [shape = 'u8[512]{0}', space=smem, size = 0x200, scoped, tag = 'input window, operand 2, single buffered']
    #allocation3 [shape = 's32[1]{0}', space=sflag, size = 0x4, scoped, tag = 'scoped memory for random_model_forward.1']
    #allocation4 [shape = 's32[1]{0}', space=sflag, size = 0x4, scoped, tag = 'scoped memory for random_model_forward.1']
    #allocation5 [shape = 'u8[1024]{0}', space=vmem, size = 0x400, scoped, tag = 'output window, operand 0, single buffered']
    %8 = vsyncpa [#allocation4], 0
    %9 = vsyncpa [#allocation3], 0
    // Predicated region
    $region2: #{random_model_forward.1} parent=1 // pred_check
      _
    $region3: #{random_model_forward.1} parent=1 // pred_check_branch
      %11 = sbr.rel (0) target = $region5
    $region4: #{random_model_forward.1} parent=1 // pred_region
      _
    $region5: #{random_model_forward.1} parent=1 // pred_fallthru
      _
    // Predicated region
    $region6: #{random_model_forward.1} parent=1 // pred_check
      _
    $region7: #{random_model_forward.1} parent=1 // pred_check_branch
      %13 = sbr.rel (0) target = $region9
    $region8: #{random_model_forward.1} parent=1 // pred_region
      _
    $region9: #{random_model_forward.1} parent=1 // pred_fallthru
      _
    // Predicated region
    $region10: #{random_model_forward.1} parent=1 // pred_check
      _
    $region11: #{random_model_forward.1} parent=1 // pred_check_branch
      %15 = sbr.rel (0) target = $region13
    $region12: #{random_model_forward.1} parent=1 // pred_region
      %17 = vsyncadd [#allocation4], 0
      %s19 = sshll.u32 %s2, 4
      %s20 = int_to_ptr.vmem [resolvable:$true] %s19
      %22 = dma.vmem_to_smem %s20, 16, [#allocation2], [#allocation4]
    $region13: #{random_model_forward.1} parent=1 // pred_fallthru
      _
    // Predicated region
    $region14: #{random_model_forward.1} parent=1 // pred_check
      _
    $region15: #{random_model_forward.1} parent=1 // pred_check_branch
      %24 = sbr.rel (0) target = $region17
    $region16: #{random_model_forward.1} parent=1 // pred_region
      %26 = dma.done [#allocation4], 16
    $region17: #{random_model_forward.1} parent=1 // pred_fallthru
      _
    %27 = sfence
    %v28 = vld [vmem:[%s0] sm:$0x3]
    %s29 = scalar_lea.vmem %s0, 2
    %v30 = vld [vmem:[%s29] sm:$0x3]
    %s31 = scalar_lea.vmem %s0, 4
    %v32 = vld [vmem:[%s31] sm:$0x3]
    %s33 = scalar_lea.vmem %s0, 6
    %v34 = vld [vmem:[%s33] sm:$0x3]
    %s35 = sld [smem:[#allocation2]]
    %v36 = vstv %s35
    %v37 = vmul.f32 %v28, %v36
    %s38 = sld [smem:[#allocation2 + $0x4]]
    %v39 = vstv %s38
    %v40 = vmul.f32 %v30, %v39
    %v41 = vadd.f32 %v37, %v40
    %s42 = sld [smem:[#allocation2 + $0x8]]
    %v43 = vstv %s42
    %v44 = vmul.f32 %v32, %v43
    %v45 = vadd.f32 %v41, %v44
    %s46 = sld [smem:[#allocation2 + $0xc]]
    %v47 = vstv %s46
    %v48 = vmul.f32 %v34, %v47
    %v49 = vadd.f32 %v45, %v48
    %s50 = sld [smem:[#allocation2 + $0x10]]
    %v51 = vstv %s50
    %v52 = vadd.f32 %v49, %v51
    %v53 = vtanh.pop %v52
    %s54 = sld [smem:[#allocation2 + $0x1]]
    %v55 = vstv %s54
    %v56 = vmul.f32 %v28, %v55
    %s57 = sld [smem:[#allocation2 + $0x5]]
    %v58 = vstv %s57
    %v59 = vmul.f32 %v30, %v58
    %v60 = vadd.f32 %v56, %v59
    %s61 = sld [smem:[#allocation2 + $0x9]]
    %v62 = vstv %s61
    %v63 = vmul.f32 %v32, %v62
    %v64 = vadd.f32 %v60, %v63
    %s65 = sld [smem:[#allocation2 + $0xd]]
    %v66 = vstv %s65
    %v67 = vmul.f32 %v34, %v66
    %v68 = vadd.f32 %v64, %v67
    %s69 = sld [smem:[#allocation2 + $0x11]]
    %v70 = vstv %s69
    %v71 = vadd.f32 %v68, %v70
    %v72 = vtanh.pop %v71
    %s73 = sld [smem:[#allocation2 + $0x2]]
    %v74 = vstv %s73
    %v75 = vmul.f32 %v28, %v74
    %s76 = sld [smem:[#allocation2 + $0x6]]
    %v77 = vstv %s76
    %v78 = vmul.f32 %v30, %v77
    %v79 = vadd.f32 %v75, %v78
    %s80 = sld [smem:[#allocation2 + $0xa]]
    %v81 = vstv %s80
    %v82 = vmul.f32 %v32, %v81
    %v83 = vadd.f32 %v79, %v82
    %s84 = sld [smem:[#allocation2 + $0xe]]
    %v85 = vstv %s84
    %v86 = vmul.f32 %v34, %v85
    %v87 = vadd.f32 %v83, %v86
    %s88 = sld [smem:[#allocation2 + $0x12]]
    %v89 = vstv %s88
    %v90 = vadd.f32 %v87, %v89
    %v91 = vtanh.pop %v90
    %s92 = sld [smem:[#allocation2 + $0x3]]
    %v93 = vstv %s92
    %v94 = vmul.f32 %v28, %v93
    %s95 = sld [smem:[#allocation2 + $0x7]]
    %v96 = vstv %s95
    %v97 = vmul.f32 %v30, %v96
    %v98 = vadd.f32 %v94, %v97
    %s99 = sld [smem:[#allocation2 + $0xb]]
    %v100 = vstv %s99
    %v101 = vmul.f32 %v32, %v100
    %v102 = vadd.f32 %v98, %v101
    %s103 = sld [smem:[#allocation2 + $0xf]]
    %v104 = vstv %s103
    %v105 = vmul.f32 %v34, %v104
    %v106 = vadd.f32 %v102, %v105
    %s107 = sld [smem:[#allocation2 + $0x13]]
    %v108 = vstv %s107
    %v109 = vadd.f32 %v106, %v108
    %v110 = vtanh.pop %v109
    %s111 = sld [smem:[#allocation2 + $0x14]]
    %v112 = vstv %s111
    %v113 = vmul.f32 %v53, %v112
    %s114 = sld [smem:[#allocation2 + $0x18]]
    %v115 = vstv %s114
    %v116 = vmul.f32 %v72, %v115
    %v117 = vadd.f32 %v113, %v116
    %s118 = sld [smem:[#allocation2 + $0x1c]]
    %v119 = vstv %s118
    %v120 = vmul.f32 %v91, %v119
    %v121 = vadd.f32 %v117, %v120
    %s122 = sld [smem:[#allocation2 + $0x20]]
    %v123 = vstv %s122
    %v124 = vmul.f32 %v110, %v123
    %v125 = vadd.f32 %v121, %v124
    %s126 = sld [smem:[#allocation2 + $0x24]]
    %v127 = vstv %s126
    %v128 = vadd.f32 %v125, %v127
    %s129 = sld [smem:[#allocation2 + $0x15]]
    %v130 = vstv %s129
    %v131 = vmul.f32 %v53, %v130
    %s132 = sld [smem:[#allocation2 + $0x19]]
    %v133 = vstv %s132
    %v134 = vmul.f32 %v72, %v133
    %v135 = vadd.f32 %v131, %v134
    %s136 = sld [smem:[#allocation2 + $0x1d]]
    %v137 = vstv %s136
    %v138 = vmul.f32 %v91, %v137
    %v139 = vadd.f32 %v135, %v138
    %s140 = sld [smem:[#allocation2 + $0x21]]
    %v141 = vstv %s140
    %v142 = vmul.f32 %v110, %v141
    %v143 = vadd.f32 %v139, %v142
    %s144 = sld [smem:[#allocation2 + $0x25]]
    %v145 = vstv %s144
    %v146 = vadd.f32 %v143, %v145
    %s147 = sld [smem:[#allocation2 + $0x16]]
    %v148 = vstv %s147
    %v149 = vmul.f32 %v53, %v148
    %s150 = sld [smem:[#allocation2 + $0x1a]]
    %v151 = vstv %s150
    %v152 = vmul.f32 %v72, %v151
    %v153 = vadd.f32 %v149, %v152
    %s154 = sld [smem:[#allocation2 + $0x1e]]
    %v155 = vstv %s154
    %v156 = vmul.f32 %v91, %v155
    %v157 = vadd.f32 %v153, %v156
    %s158 = sld [smem:[#allocation2 + $0x22]]
    %v159 = vstv %s158
    %v160 = vmul.f32 %v110, %v159
    %v161 = vadd.f32 %v157, %v160
    %s162 = sld [smem:[#allocation2 + $0x26]]
    %v163 = vstv %s162
    %v164 = vadd.f32 %v161, %v163
    %s165 = sld [smem:[#allocation2 + $0x17]]
    %v166 = vstv %s165
    %v167 = vmul.f32 %v53, %v166
    %s168 = sld [smem:[#allocation2 + $0x1b]]
    %v169 = vstv %s168
    %v170 = vmul.f32 %v72, %v169
    %v171 = vadd.f32 %v167, %v170
    %s172 = sld [smem:[#allocation2 + $0x1f]]
    %v173 = vstv %s172
    %v174 = vmul.f32 %v91, %v173
    %v175 = vadd.f32 %v171, %v174
    %s176 = sld [smem:[#allocation2 + $0x23]]
    %v177 = vstv %s176
    %v178 = vmul.f32 %v110, %v177
    %v179 = vadd.f32 %v175, %v178
    %s180 = sld [smem:[#allocation2 + $0x27]]
    %v181 = vstv %s180
    %v182 = vadd.f32 %v179, %v181
    %v183 = vld [vmem:[%s1] sm:$0xff]
    %v184 = vperm.slane %v183, 0
    %v185 = vmul.f32 %v128, %v184
    %v186 = vperm.slane %v183, 1
    %v187 = vmul.f32 %v146, %v186
    %v188 = vadd.f32 %v185, %v187
    %v189 = vperm.slane %v183, 2
    %v190 = vmul.f32 %v164, %v189
    %v191 = vadd.f32 %v188, %v190
    %v192 = vperm.slane %v183, 3
    %v193 = vmul.f32 %v182, %v192
    %v194 = vadd.f32 %v191, %v193
    %vm195 = vcmask 517120
    %v196 = vsel %vm195, %v194, 0.0
    %197 = vadd.xlane.f32.xlu0 %v196
    %v198 = vpop.xlane.xlu0 %197
    %s199 = sld [smem:[#allocation2 + $0x28]]
    %v200 = vstv %s199
    %v201 = vadd.f32 %v198, %v200
    %v202 = vperm.slane %v183, 4
    %v203 = vmul.f32 %v128, %v202
    %v204 = vperm.slane %v183, 5
    %v205 = vmul.f32 %v146, %v204
    %v206 = vadd.f32 %v203, %v205
    %v207 = vperm.slane %v183, 6
    %v208 = vmul.f32 %v164, %v207
    %v209 = vadd.f32 %v206, %v208
    %v210 = vperm.slane %v183, 7
    %v211 = vmul.f32 %v182, %v210
    %v212 = vadd.f32 %v209, %v211
    %v213 = vsel %vm195, %v212, 0.0
    %214 = vadd.xlane.f32.xlu0 %v213
    %v215 = vpop.xlane.xlu0 %214
    %s216 = sld [smem:[#allocation2 + $0x29]]
    %v217 = vstv %s216
    %v218 = vadd.f32 %v215, %v217
    %v219 = vmax.f32 %v201, %v218
    %v220 = vsub.f32 %v201, %v219
    %v221 = vsub.f32 %v218, %v219
    %v222 = vmul.f32 %v220, 1.442695
    %v223 = vpow.pop %v222
    %v224 = vmul.f32 %v221, 1.442695
    %v225 = vpow.pop %v224
    %v226 = vadd.f32 %v223, %v225
    %v227 = vlog2.pop %v226
    %v228 = vmul.f32 %v227, 0.6931472
    %v229 = vsub.f32 %v220, %v228
    %v230 = vsub.f32 %v221, %v228
    %vm231 = vcmask 7168
    %v232 = vsel %vm231, %v229, %v230
    %vm233 = vcmask 9216
    %234 = vst.msk [vmem:[#allocation5] sm:$0x3] %vm233, %v232
    // Predicated region
    $region18: #{random_model_forward.1} parent=1 // pred_check
      _
    $region19: #{random_model_forward.1} parent=1 // pred_check_branch
      %236 = sbr.rel (0) target = $region21
    $region20: #{random_model_forward.1} parent=1 // pred_region
      %238 = vsyncadd [#allocation3], 0
      %s240 = sshll.u32 [#allocation5], 4
      %s241 = int_to_ptr.vmem [resolvable:$true] %s240
      %s242 = sshll.u32 %s3, 4
      %s243 = int_to_ptr.hbm [resolvable:$true] %s242
      %245 = dma.vmem_to_hbm [thread:$0]  %s241, 32, %s243, [#allocation3]
    $region21: #{random_model_forward.1} parent=1 // pred_fallthru
      _
    // Predicated region
    $region22: #{random_model_forward.1} parent=1 // pred_check
      _
    $region23: #{random_model_forward.1} parent=1 // pred_check_branch
      %247 = sbr.rel (0) target = $region25
    $region24: #{random_model_forward.1} parent=1 // pred_region
      %249 = dma.done [#allocation3], 32
    $region25: #{random_model_forward.1} parent=1 // pred_fallthru
      _
    %250 = vsyncpa [#allocation3], 1
    %251 = vsyncpa [#allocation4], 1

</llo_original>
